<compile_context>
chip_gen: v7x
topology: tpu7x:2x2x1
jax: 0.10.0
libtpu: 0.0.40
codegen_flags: <defaults>
</compile_context>

<pallas_src>
import jax
import jax.numpy as jnp
from jax.experimental import pallas as pl
from jax.experimental.pallas import tpu as pltpu

HIDDEN = 32  # in_size -> 32 -> out_size, per the module spec


def _round_down(v, m):
    return (v // m) * m


def _vmem_capacity_bytes():
    """Per-TensorCore VMEM capacity; conservative 64 MiB fallback (v7x floor)."""
    try:
        cap = getattr(pltpu.get_tpu_info(), "vmem_capacity_bytes", None)
        if cap:
            return int(cap)
    except Exception:
        pass
    return 64 * 1024 * 1024


def _pack_factor(in_size):
    """Rows packed per packed-row: target MXU-width contraction, cap at 8."""
    try:
        kind = jax.devices()[0].device_kind.lower()
    except Exception:
        kind = ""
    mxu = 128 if "v5" in kind else 256  # v5e/v5p: 128-wide MXU; v6e/v7x: 256-wide
    return max(1, min(mxu // max(in_size, 1), 8))


def _pick_block_rows_packed(n_packed, pin, pout, phid, vmem_budget):
    """Packed-row tile TM from the generation-aware VMEM budget."""
    weight_bytes = 4 * (pin * phid + phid * pout + phid + pout)
    # x and y blocks are double-buffered by the pipeline; weights are resident
    # (count them twice anyway) plus a fixed safety margin.
    stream_budget = max(1 << 20, vmem_budget - 2 * weight_bytes - (4 << 20))
    row_bytes = 2 * 4 * (pin + pout)          # double-buffered x + y, f32
    tm = stream_budget // row_bytes
    if tm >= 256:
        tm = _round_down(tm, 256)
    else:
        tm = max(8, _round_down(tm, 8))
    return tm


def _mlp_kernel(x_ref, w1_ref, b1_ref, w2_ref, b2_ref, y_ref):
    # x_ref : (TM, P*in)  packed row tile (lane-dense, row-major)
    # w1_ref: (P*in, P*32) block-diagonal W1^T,  b1_ref: (1, P*32)
    # w2_ref: (P*32, P*out) block-diagonal W2^T, b2_ref: (1, P*out)
    # y_ref : (TM, P*out) packed output tile (row-major, no wrapper transpose)
    h = jnp.dot(x_ref[...], w1_ref[...], preferred_element_type=jnp.float32)
    h = jnp.maximum(h + b1_ref[...], 0.0)
    y = jnp.dot(h, w2_ref[...], preferred_element_type=jnp.float32)
    y_ref[...] = jnp.maximum(y + b2_ref[...], 0.0).astype(y_ref.dtype)


def neuralnet_forward(x, w1, b1, w2, b2, *, block_rows=None):
    """Forward pass of the two-layer MLP as a single fused Pallas kernel.

    x : (N, in_size) float32
    w1: (32, in_size),  b1: (32,)        -- torch.nn.Linear layout
    w2: (out_size, 32), b2: (out_size,)
    returns (N, out_size) float32
    """
    n, in_size = x.shape
    hidden, in_size_w = w1.shape
    out_size = w2.shape[0]
    assert in_size_w == in_size and w2.shape[1] == hidden

    p = _pack_factor(in_size)
    pin, phid, pout = p * in_size, p * hidden, p * out_size

    # Pad only to a multiple of P (<= P-1 rows), never to a multiple of the tile.
    rem = n % p
    n_pad = n + ((p - rem) % p)
    if n_pad != n:
        x = jnp.pad(x, ((0, n_pad - n), (0, 0)))
    n_packed = n_pad // p
    x_packed = x.astype(jnp.float32).reshape(n_packed, pin)  # free, contiguous

    eye = jnp.eye(p, dtype=jnp.float32)
    w1big = jnp.kron(eye, w1.T.astype(jnp.float32))            # (P*in,  P*32)
    w2big = jnp.kron(eye, w2.T.astype(jnp.float32))            # (P*32,  P*out)
    b1big = jnp.tile(b1.astype(jnp.float32), p).reshape(1, phid)
    b2big = jnp.tile(b2.astype(jnp.float32), p).reshape(1, pout)

    vmem_budget = (_vmem_capacity_bytes() * 3) // 4   # ~96 MiB v5e/v6e, ~48 MiB v7x

    if block_rows is None:
        tm = _pick_block_rows_packed(n_packed, pin, pout, phid, vmem_budget)
    else:
        tm = max(8, _round_down(max(block_rows // p, 8), 8))
    # Never exceed the array; a full-extent block is exempt from the x8 rule.
    tm = min(tm, n_packed)
    if tm < n_packed:
        tm = max(8, _round_down(tm, 8))

    grid = (pl.cdiv(n_packed, tm),)   # ragged last block: OOB rows never written

    flops = 2 * n_packed * (pin * phid + phid * pout) + 2 * n_packed * (phid + pout)
    bytes_accessed = 4 * (n_packed * (pin + pout)
                          + pin * phid + phid * pout + phid + pout)

    y_packed = pl.pallas_call(
        _mlp_kernel,
        out_shape=jax.ShapeDtypeStruct((n_packed, pout), jnp.float32),
        grid=grid,
        in_specs=[
            # Streamed, double-buffered packed-x row tiles.
            pl.BlockSpec((tm, pin), lambda i: (i, 0)),
            # Constant block index -> weights/biases stay resident in VMEM.
            pl.BlockSpec((pin, phid), lambda i: (0, 0)),
            pl.BlockSpec((1, phid), lambda i: (0, 0)),
            pl.BlockSpec((phid, pout), lambda i: (0, 0)),
            pl.BlockSpec((1, pout), lambda i: (0, 0)),
        ],
        out_specs=pl.BlockSpec((tm, pout), lambda i: (i, 0)),
        compiler_params=pltpu.CompilerParams(
            dimension_semantics=("parallel",),   # shardable across v7x's 2 TCs
            vmem_limit_bytes=int(vmem_budget),
        ),
        cost_estimate=pl.CostEstimate(
            flops=int(flops), transcendentals=0, bytes_accessed=int(bytes_accessed)),
    )(x_packed, w1big, b1big, w2big, b2big)

    # Free, contiguous un-pack; slice off the (<= P-1) padded rows if any.
    y = y_packed.reshape(n_pad, out_size)
    return y[:n] if n_pad != n else y


def init_params(key, in_size, out_size):
    """torch.nn.Linear-style init, in the torch (out_features, in_features) layout."""
    k1, k2, k3, k4 = jax.random.split(key, 4)
    bound1 = 1.0 / jnp.sqrt(in_size)
    bound2 = 1.0 / jnp.sqrt(HIDDEN)
    w1 = jax.random.uniform(k1, (HIDDEN, in_size), jnp.float32, -bound1, bound1)
    b1 = jax.random.uniform(k2, (HIDDEN,), jnp.float32, -bound1, bound1)
    w2 = jax.random.uniform(k3, (out_size, HIDDEN), jnp.float32, -bound2, bound2)
    b2 = jax.random.uniform(k4, (out_size,), jnp.float32, -bound2, bound2)
    return w1, b1, w2, b2


def _reference(x, w1, b1, w2, b2):
    return jnp.maximum(jnp.maximum(x @ w1.T + b1, 0.0) @ w2.T + b2, 0.0)


if __name__ == "__main__":
    IN_SIZE, OUT_SIZE = 32, 4
    key = jax.random.PRNGKey(0)
    kx1, kx2, kp = jax.random.split(key, 3)
    w1, b1, w2, b2 = init_params(kp, IN_SIZE, OUT_SIZE)

    # 1) Multi-step pipelined grid with a ragged last block (N=1000, 256-row tiles).
    N1 = 1000
    x1 = jax.random.normal(kx1, (N1, IN_SIZE), jnp.float32)
    out1 = jax.block_until_ready(
        neuralnet_forward(x1, w1, b1, w2, b2, block_rows=256))
    ref1 = _reference(x1, w1, b1, w2, b2)
    assert out1.shape == (N1, OUT_SIZE)
    err1 = float(jnp.max(jnp.abs(out1 - ref1)))
    assert err1 < 1e-4, f"max abs err {err1}"

    # 2) Tiny batch not divisible by the pack factor (exercises the <=P-1 row pad
    #    and the single full-extent block path), auto tile selection.
    N2 = 7
    x2 = jax.random.normal(kx2, (N2, IN_SIZE), jnp.float32)
    out2 = jax.block_until_ready(neuralnet_forward(x2, w1, b1, w2, b2))
    ref2 = _reference(x2, w1, b1, w2, b2)
    assert out2.shape == (N2, OUT_SIZE)
    err2 = float(jnp.max(jnp.abs(out2 - ref2)))
    assert err2 < 1e-4, f"max abs err {err2}"

    print("KERNEL_OK")
</pallas_src>

<mosaic_0001>
module attributes {stable_mosaic.version = 11 : i64} {
  func.func @_mlp_kernel(%arg0: i32, %arg1: memref<32x256xf32, #tpu.memory_space<vmem>>, %arg2: memref<256x256xf32, #tpu.memory_space<vmem>>, %arg3: memref<1x256xf32, #tpu.memory_space<vmem>>, %arg4: memref<256x32xf32, #tpu.memory_space<vmem>>, %arg5: memref<1x32xf32, #tpu.memory_space<vmem>>, %arg6: memref<32x32xf32, #tpu.memory_space<vmem>>) attributes {dimension_semantics = [#tpu.dimension_semantics<parallel>], iteration_bounds = array<i64: 4>, scalar_prefetch = 0 : i64, scratch_operands = 0 : i64, tpu.core_type = #tpu.core_type<tc>, window_params = [{transform_indices = @transform_0, window_bounds = array<i64: 32, 256>}, {pipeline_mode = #tpu.pipeline_mode<synchronous>, transform_indices = @transform_1, window_bounds = array<i64: 256, 256>}, {pipeline_mode = #tpu.pipeline_mode<synchronous>, transform_indices = @transform_2, window_bounds = array<i64: 1, 256>}, {pipeline_mode = #tpu.pipeline_mode<synchronous>, transform_indices = @transform_3, window_bounds = array<i64: 256, 32>}, {pipeline_mode = #tpu.pipeline_mode<synchronous>, transform_indices = @transform_4, window_bounds = array<i64: 1, 32>}, {transform_indices = @transform_5, window_bounds = array<i64: 32, 32>}]} {
    %c0 = arith.constant 0 : index
    %c0_0 = arith.constant 0 : index
    %0 = vector.load %arg1[%c0, %c0_0] : memref<32x256xf32, #tpu.memory_space<vmem>>, vector<32x256xf32>
    %c0_1 = arith.constant 0 : index
    %c0_2 = arith.constant 0 : index
    %1 = vector.load %arg2[%c0_1, %c0_2] : memref<256x256xf32, #tpu.memory_space<vmem>>, vector<256x256xf32>
    %cst = arith.constant dense<0.000000e+00> : vector<32x256xf32>
    %2 = tpu.matmul %0, %1, %cst {dimension_numbers = #tpu.dot_dimension_numbers<[1], [0], [0], [1], [0, 0, 1, 1], [], []>} : vector<32x256xf32>, vector<256x256xf32>, vector<32x256xf32> -> vector<32x256xf32>
    %c0_3 = arith.constant 0 : index
    %c0_4 = arith.constant 0 : index
    %3 = vector.load %arg3[%c0_3, %c0_4] : memref<1x256xf32, #tpu.memory_space<vmem>>, vector<1x256xf32>
    %4 = vector.broadcast %3 : vector<1x256xf32> to vector<32x256xf32>
    %5 = arith.addf %2, %4 : vector<32x256xf32>
    %cst_5 = arith.constant 0.000000e+00 : f32
    %6 = vector.broadcast %cst_5 : f32 to vector<32x256xf32>
    %7 = arith.maximumf %5, %6 : vector<32x256xf32>
    %c0_6 = arith.constant 0 : index
    %c0_7 = arith.constant 0 : index
    %8 = vector.load %arg4[%c0_6, %c0_7] : memref<256x32xf32, #tpu.memory_space<vmem>>, vector<256x32xf32>
    %cst_8 = arith.constant dense<0.000000e+00> : vector<32x32xf32>
    %9 = tpu.matmul %7, %8, %cst_8 {dimension_numbers = #tpu.dot_dimension_numbers<[1], [0], [0], [1], [0, 0, 1, 1], [], []>} : vector<32x256xf32>, vector<256x32xf32>, vector<32x32xf32> -> vector<32x32xf32>
    %c0_9 = arith.constant 0 : index
    %c0_10 = arith.constant 0 : index
    %10 = vector.load %arg5[%c0_9, %c0_10] : memref<1x32xf32, #tpu.memory_space<vmem>>, vector<1x32xf32>
    %11 = vector.broadcast %10 : vector<1x32xf32> to vector<32x32xf32>
    %12 = arith.addf %9, %11 : vector<32x32xf32>
    %cst_11 = arith.constant 0.000000e+00 : f32
    %13 = vector.broadcast %cst_11 : f32 to vector<32x32xf32>
    %14 = arith.maximumf %12, %13 : vector<32x32xf32>
    %c0_12 = arith.constant 0 : index
    %c0_13 = arith.constant 0 : index
    %15 = vector.load %arg6[%c0_12, %c0_13] : memref<32x32xf32, #tpu.memory_space<vmem>>, vector<32x32xf32>
    tpu.vector_store %arg6[%c0_12, %c0_13], %14 {strides = array<i32>} : memref<32x32xf32, #tpu.memory_space<vmem>>, vector<32x32xf32>,
    return
  }
  func.func @transform_0(%arg0: i32) -> (i32, i32) {
    %c0_i32 = arith.constant 0 : i32
    %c0_i32_0 = arith.constant 0 : i32
    return %arg0, %c0_i32 : i32, i32
  }
  func.func @transform_1(%arg0: i32) -> (i32, i32) {
    %c0_i32 = arith.constant 0 : i32
    %c0_i32_0 = arith.constant 0 : i32
    %c0_i32_1 = arith.constant 0 : i32
    return %c0_i32, %c0_i32_0 : i32, i32
  }
  func.func @transform_2(%arg0: i32) -> (i32, i32) {
    %c0_i32 = arith.constant 0 : i32
    %c0_i32_0 = arith.constant 0 : i32
    %c0_i32_1 = arith.constant 0 : i32
    return %c0_i32, %c0_i32_0 : i32, i32
  }
  func.func @transform_3(%arg0: i32) -> (i32, i32) {
    %c0_i32 = arith.constant 0 : i32
    %c0_i32_0 = arith.constant 0 : i32
    %c0_i32_1 = arith.constant 0 : i32
    return %c0_i32, %c0_i32_0 : i32, i32
  }
  func.func @transform_4(%arg0: i32) -> (i32, i32) {
    %c0_i32 = arith.constant 0 : i32
    %c0_i32_0 = arith.constant 0 : i32
    %c0_i32_1 = arith.constant 0 : i32
    return %c0_i32, %c0_i32_0 : i32, i32
  }
  func.func @transform_5(%arg0: i32) -> (i32, i32) {
    %c0_i32 = arith.constant 0 : i32
    %c0_i32_0 = arith.constant 0 : i32
    return %arg0, %c0_i32 : i32, i32
  }
}

</mosaic_0001>

<llo_original>
// kernel: tpu_custom_call.1
$region0: #{tpu_custom_call.1}
  #allocation0 [shape = 'u32[]', space=smem, size = 0x4, offset = 0x4, fixed_abs, tag = 'smem constant byte address 0x4 - core index']
  #allocation1 [shape = 'u32[144,128]{1,0:T(1,128)}', space=vmem, size = 0x12000, scoped, tag = 'internal scratch']
  %s0 = inlined_call_operand.vmem [shape: f32[125,256], index: 0, kind: input, shape index: {}]
  %s1 = inlined_call_operand.hbm [shape: f32[256,256], index: 1, kind: input, shape index: {}]
  %s2 = inlined_call_operand.vmem [shape: f32[1,256], index: 2, kind: input, shape index: {}]
  %s3 = inlined_call_operand.vmem [shape: f32[256,32], index: 3, kind: input, shape index: {}]
  %s4 = inlined_call_operand.vmem [shape: f32[1,32], index: 4, kind: input, shape index: {}]
  %s5 = inlined_call_operand.vmem [shape: f32[125,32], index: 5, kind: output, shape index: {}]
  %s6 = sld [smem:[#allocation0]]
  $region57: #{tpu_custom_call.1} parent=0
    _
  %s8 = ssub.s32 1, %s6
  %s9 = scalar_select 0, %s8, %s6
  $region1: #{tpu_custom_call.1} parent=0
    #allocation2 [shape = 'u8[262144]{0}', space=vmem, size = 0x40000, scoped, tag = 'input window, operand 1, single buffered']
    #allocation3 [shape = 's32[2]{0}', space=sflag, size = 0x8, scoped, tag = 'scoped memory for tpu_custom_call.1']
    %10 = vsyncpa [#allocation3], 0
    loop: start=0, step=1, limit=6
    $region2: #{tpu_custom_call.1} parent=1 // loop_pre_header
      _
    $region3: #{tpu_custom_call.1} parent=1 // loop_header
      %s12 = sphi 0, %s16
      %p13 = scmp.ge.s32.totalorder %s12, 6
      %s22 = sphi 0, %s24
      %s25 = sphi 0, %s22
      %s26 = sphi 0, %s25
      %s42 = sphi 0, %s26
      %s46 = sphi 0, %s46
      %s48 = sphi 0, %s46
      %s49 = sphi 0, %s48
      %s63 = sphi 0, %s49
      %s67 = sphi 0, %s67
      %s69 = sphi 0, %s67
      %s70 = sphi 0, %s69
      %s84 = sphi 0, %s70
      %s88 = sphi 0, %s88
      %s90 = sphi 0, %s88
      %s91 = sphi 0, %s90
      %s105 = sphi 0, %s91
      %s109 = sphi 0, %s109
      %s111 = sphi 0, %s109
      %s112 = sphi 0, %s111
      %s126 = sphi 0, %s112
      %s132 = sphi 0, %s134
      %s135 = sphi 0, %s132
      %s136 = sphi 0, %s135
      %s152 = sphi 0, %s136
    $region4: #{tpu_custom_call.1} parent=1 // loop_header_branch
      %15 = sbr.rel (%p13) target = $region8
    $region5: #{tpu_custom_call.1} parent=1 // loop_body
      %s17 = ssub.s32 %s12, 1
      %s18 = ssub.s32 %s12, 2
      %s19 = sadd.s32 %s12, 1
      %s20 = ssub.s32 %s12, %s19
      %p21 = scmp.eq.s32.totalorder %s20, 0
      %s23 = sadd.s32 %s22, 1
      %s24 = scalar_select %p21, %s22, %s23
      %p27 = pneg %p21
      %p28 = scmp.eq.s32.totalorder %s12, 3
      %p29 = por %p27, %p28
      %p30 = scmp.ne.s32.totalorder %s22, %s25
      %p31 = scmp.eq.s32.totalorder %s12, 0
      %p32 = por %p30, %p31
      %p33 = scmp.ne.s32.totalorder %s22, %s25
      %p34 = scmp.eq.s32.totalorder %s17, 3
      %p35 = por %p33, %p34
      %p36 = scmp.ne.s32.totalorder %s25, %s26
      %p37 = scmp.eq.s32.totalorder %s17, 0
      %p38 = por %p36, %p37
      %p39 = scmp.ne.s32.totalorder %s25, %s26
      %p40 = scmp.eq.s32.totalorder %s18, 3
      %p41 = por %p39, %p40
      %p43 = scmp.ne.s32.totalorder %s26, %s42
      %p44 = scmp.eq.s32.totalorder %s18, 0
      %p45 = por %p43, %p44
      %s47 = sadd.s32 %s46, 1
      %p50 = scmp.eq.s32.totalorder %s12, 3
      %p51 = scmp.ne.s32.totalorder %s46, %s48
      %p52 = scmp.eq.s32.totalorder %s12, 0
      %p53 = por %p51, %p52
      %p54 = scmp.ne.s32.totalorder %s46, %s48
      %p55 = scmp.eq.s32.totalorder %s17, 3
      %p56 = por %p54, %p55
      %p57 = scmp.ne.s32.totalorder %s48, %s49
      %p58 = scmp.eq.s32.totalorder %s17, 0
      %p59 = por %p57, %p58
      %p60 = scmp.ne.s32.totalorder %s48, %s49
      %p61 = scmp.eq.s32.totalorder %s18, 3
      %p62 = por %p60, %p61
      %p64 = scmp.ne.s32.totalorder %s49, %s63
      %p65 = scmp.eq.s32.totalorder %s18, 0
      %p66 = por %p64, %p65
      %s68 = sadd.s32 %s67, 1
      %p71 = scmp.eq.s32.totalorder %s12, 3
      %p72 = scmp.ne.s32.totalorder %s67, %s69
      %p73 = scmp.eq.s32.totalorder %s12, 0
      %p74 = por %p72, %p73
      %p75 = scmp.ne.s32.totalorder %s67, %s69
      %p76 = scmp.eq.s32.totalorder %s17, 3
      %p77 = por %p75, %p76
      %p78 = scmp.ne.s32.totalorder %s69, %s70
      %p79 = scmp.eq.s32.totalorder %s17, 0
      %p80 = por %p78, %p79
      %p81 = scmp.ne.s32.totalorder %s69, %s70
      %p82 = scmp.eq.s32.totalorder %s18, 3
      %p83 = por %p81, %p82
      %p85 = scmp.ne.s32.totalorder %s70, %s84
      %p86 = scmp.eq.s32.totalorder %s18, 0
      %p87 = por %p85, %p86
      %s89 = sadd.s32 %s88, 1
      %p92 = scmp.eq.s32.totalorder %s12, 3
      %p93 = scmp.ne.s32.totalorder %s88, %s90
      %p94 = scmp.eq.s32.totalorder %s12, 0
      %p95 = por %p93, %p94
      %p96 = scmp.ne.s32.totalorder %s88, %s90
      %p97 = scmp.eq.s32.totalorder %s17, 3
      %p98 = por %p96, %p97
      %p99 = scmp.ne.s32.totalorder %s90, %s91
      %p100 = scmp.eq.s32.totalorder %s17, 0
      %p101 = por %p99, %p100
      %p102 = scmp.ne.s32.totalorder %s90, %s91
      %p103 = scmp.eq.s32.totalorder %s18, 3
      %p104 = por %p102, %p103
      %p106 = scmp.ne.s32.totalorder %s91, %s105
      %p107 = scmp.eq.s32.totalorder %s18, 0
      %p108 = por %p106, %p107
      %s110 = sadd.s32 %s109, 1
      %p113 = scmp.eq.s32.totalorder %s12, 3
      %p114 = scmp.ne.s32.totalorder %s109, %s111
      %p115 = scmp.eq.s32.totalorder %s12, 0
      %p116 = por %p114, %p115
      %p117 = scmp.ne.s32.totalorder %s109, %s111
      %p118 = scmp.eq.s32.totalorder %s17, 3
      %p119 = por %p117, %p118
      %p120 = scmp.ne.s32.totalorder %s111, %s112
      %p121 = scmp.eq.s32.totalorder %s17, 0
      %p122 = por %p120, %p121
      %p123 = scmp.ne.s32.totalorder %s111, %s112
      %p124 = scmp.eq.s32.totalorder %s18, 3
      %p125 = por %p123, %p124
      %p127 = scmp.ne.s32.totalorder %s112, %s126
      %p128 = scmp.eq.s32.totalorder %s18, 0
      %p129 = por %p127, %p128
      %s130 = ssub.s32 %s12, %s19
      %p131 = scmp.eq.s32.totalorder %s130, 0
      %s133 = sadd.s32 %s132, 1
      %s134 = scalar_select %p131, %s132, %s133
      %p137 = pneg %p131
      %p138 = scmp.eq.s32.totalorder %s12, 3
      %p139 = por %p137, %p138
      %p140 = scmp.ne.s32.totalorder %s132, %s135
      %p141 = scmp.eq.s32.totalorder %s12, 0
      %p142 = por %p140, %p141
      %p143 = scmp.ne.s32.totalorder %s132, %s135
      %p144 = scmp.eq.s32.totalorder %s17, 3
      %p145 = por %p143, %p144
      %p146 = scmp.ne.s32.totalorder %s135, %s136
      %p147 = scmp.eq.s32.totalorder %s17, 0
      %p148 = por %p146, %p147
      %p149 = scmp.ne.s32.totalorder %s135, %s136
      %p150 = scmp.eq.s32.totalorder %s18, 3
      %p151 = por %p149, %p150
      %p153 = scmp.ne.s32.totalorder %s136, %s152
      %p154 = scmp.eq.s32.totalorder %s18, 0
      %p155 = por %p153, %p154
      %p156 = scmp.le.s32.totalorder 1, %s12
      %p157 = scmp.lt.s32.totalorder %s12, 5
      %p158 = pnand %p156, %p157
      %p159 = pneg %p158
      // Predicated region
      $region9: #{tpu_custom_call.1} parent=5 // pred_check
        _
      $region10: #{tpu_custom_call.1} parent=5 // pred_check_branch
        %161 = sbr.rel (%p158) target = $region12
      $region11: #{tpu_custom_call.1} parent=5 // pred_region
        %s162 = ssub.s32 %s12, 1
        // Predicated region
        $region13: #{tpu_custom_call.1} parent=11 // pred_check
          %p163 = pneg %p59
        $region14: #{tpu_custom_call.1} parent=11 // pred_check_branch
          %165 = sbr.rel (%p163) target = $region16
        $region15: #{tpu_custom_call.1} parent=11 // pred_region
          %s167 = ssub.s32 8192, 8192
          %168 = vsyncadd [#allocation3], %s167
          %s169 = sshll.u32 [#allocation2], 4
          %s170 = int_to_ptr.vmem [resolvable:$true] %s169
          %175 = dma.hbm_to_vmem [thread:$0]  %s1, 8192, %s170, [#allocation3], 256, 256, 16
        $region16: #{tpu_custom_call.1} parent=11 // pred_fallthru
          _
        // Predicated region
        $region17: #{tpu_custom_call.1} parent=11 // pred_check
          %p176 = pneg %p80
        $region18: #{tpu_custom_call.1} parent=11 // pred_check_branch
          %178 = sbr.rel (%p176) target = $region20
        $region19: #{tpu_custom_call.1} parent=11 // pred_region
          _
        $region20: #{tpu_custom_call.1} parent=11 // pred_fallthru
          _
        // Predicated region
        $region21: #{tpu_custom_call.1} parent=11 // pred_check
          %p179 = pneg %p101
        $region22: #{tpu_custom_call.1} parent=11 // pred_check_branch
          %181 = sbr.rel (%p179) target = $region24
        $region23: #{tpu_custom_call.1} parent=11 // pred_region
          _
        $region24: #{tpu_custom_call.1} parent=11 // pred_fallthru
          _
        // Predicated region
        $region25: #{tpu_custom_call.1} parent=11 // pred_check
          %p182 = pneg %p122
        $region26: #{tpu_custom_call.1} parent=11 // pred_check_branch
          %184 = sbr.rel (%p182) target = $region28
        $region27: #{tpu_custom_call.1} parent=11 // pred_region
          _
        $region28: #{tpu_custom_call.1} parent=11 // pred_fallthru
          _
      $region12: #{tpu_custom_call.1} parent=5 // pred_fallthru
        _
      %p185 = scmp.lt.s32.totalorder %s12, 4
      // Predicated region
      $region29: #{tpu_custom_call.1} parent=5 // pred_check
        %p186 = pneg %p185
      $region30: #{tpu_custom_call.1} parent=5 // pred_check_branch
        %188 = sbr.rel (%p186) target = $region32
      $region31: #{tpu_custom_call.1} parent=5 // pred_region
        // Predicated region
        $region33: #{tpu_custom_call.1} parent=31 // pred_check
          %p189 = pneg %p32
        $region34: #{tpu_custom_call.1} parent=31 // pred_check_branch
          %191 = sbr.rel (%p189) target = $region36
        $region35: #{tpu_custom_call.1} parent=31 // pred_region
          %s192 = smul.u32 4, %s12
          %p193 = scmp.lt.s32.totalorder %s192, 15
          %s194 = scalar_select %p193, %s192, 15
          %s195 = smul.addr %s194, 2
          %s196 = smul.addr %s195, 8
          %s197 = scalar_lea.vmem %s0, %s196
          %s198 = smul.u32 4, %s12
        $region36: #{tpu_custom_call.1} parent=31 // pred_fallthru
          _
      $region32: #{tpu_custom_call.1} parent=5 // pred_fallthru
        _
      %p199 = scmp.le.s32.totalorder 1, %s12
      %p200 = scmp.lt.s32.totalorder %s12, 5
      %p201 = pnand %p199, %p200
      %p202 = pneg %p201
      // Predicated region
      $region37: #{tpu_custom_call.1} parent=5 // pred_check
        _
      $region38: #{tpu_custom_call.1} parent=5 // pred_check_branch
        %204 = sbr.rel (%p201) target = $region40
      $region39: #{tpu_custom_call.1} parent=5 // pred_region
        %s205 = ssub.s32 %s12, 1
        // Predicated region
        $region41: #{tpu_custom_call.1} parent=39 // pred_check
          %p206 = pneg %p59
        $region42: #{tpu_custom_call.1} parent=39 // pred_check_branch
          %208 = sbr.rel (%p206) target = $region44
        $region43: #{tpu_custom_call.1} parent=39 // pred_region
          %209 = dma.done [#allocation3], 8192
        $region44: #{tpu_custom_call.1} parent=39 // pred_fallthru
          _
        %s210 = smul.u32 4, %s17
        %p211 = scmp.lt.s32.totalorder %s210, 15
        %s212 = scalar_select %p211, %s210, 15
        %s213 = smul.addr %s212, 2
        %s214 = smul.addr %s213, 8
        %s215 = scalar_lea.vmem %s0, %s214
        %p216 = pneg %p38
        %p217 = pneg %p35
        %p218 = pneg %p59
        %p219 = pneg %p56
        %p220 = pneg %p80
        %p221 = pneg %p77
        %p222 = pneg %p101
        %p223 = pneg %p98
        %p224 = pneg %p122
        %p225 = pneg %p119
        %p226 = pneg %p148
        %p227 = pneg %p145
        %s228 = smul.u32 4, %s17
        %p229 = scmp.lt.s32.totalorder %s228, 15
        %s230 = scalar_select %p229, %s228, 15
        %s231 = smul.addr %s230, 8
        %s232 = scalar_lea.vmem %s5, %s231
        %s233 = smul.u32 4, %s17
        %p234 = scmp.lt.s32.totalorder %s233, 15
        %s235 = scalar_select %p234, %s233, 15
        %s236 = smul.addr %s235, 2
        %s237 = smul.addr %s236, 8
        %s238 = scalar_lea.vmem %s0, %s237
        %s239 = smul.u32 4, %s17
        %s240 = smul.u32 4, %s17
        %p241 = scmp.lt.s32.totalorder %s240, 15
        %s242 = scalar_select %p241, %s240, 15
        %s243 = smul.addr %s242, 8
        %s244 = scalar_lea.vmem %s5, %s243
        %s245 = smul.u32 4, %s17
        %v246 = vld [vmem:[%s238] sm:$0xff]
        %v247 = vld [vmem:[%s238 + $0x8] sm:$0xff]
        %v248 = vld [vmem:[%s238 + $0x10] sm:$0xff]
        %v249 = vld [vmem:[%s238 + $0x18] sm:$0xff]
        %v250 = vld [vmem:[%s238 + $0x20] sm:$0xff]
        %v251 = vld [vmem:[%s238 + $0x28] sm:$0xff]
        %v252 = vld [vmem:[%s238 + $0x30] sm:$0xff]
        %v253 = vld [vmem:[%s238 + $0x38] sm:$0xff]
        %v254 = vld [vmem:[#allocation2] sm:$0xff]
        %v255 = vld [vmem:[#allocation2 + $0x8] sm:$0xff]
        %v256 = vld [vmem:[#allocation2 + $0x10] sm:$0xff]
        %v257 = vld [vmem:[#allocation2 + $0x18] sm:$0xff]
        %v258 = vld [vmem:[#allocation2 + $0x20] sm:$0xff]
        %v259 = vld [vmem:[#allocation2 + $0x28] sm:$0xff]
        %v260 = vld [vmem:[#allocation2 + $0x30] sm:$0xff]
        %v261 = vld [vmem:[#allocation2 + $0x38] sm:$0xff]
        %v262 = vld [vmem:[#allocation2 + $0x40] sm:$0xff]
        %v263 = vld [vmem:[#allocation2 + $0x48] sm:$0xff]
        %v264 = vld [vmem:[#allocation2 + $0x50] sm:$0xff]
        %v265 = vld [vmem:[#allocation2 + $0x58] sm:$0xff]
        %v266 = vld [vmem:[#allocation2 + $0x60] sm:$0xff]
        %v267 = vld [vmem:[#allocation2 + $0x68] sm:$0xff]
        %v268 = vld [vmem:[#allocation2 + $0x70] sm:$0xff]
        %v269 = vld [vmem:[#allocation2 + $0x78] sm:$0xff]
        %v270 = vld [vmem:[#allocation2 + $0x80] sm:$0xff]
        %v271 = vld [vmem:[#allocation2 + $0x88] sm:$0xff]
        %v272 = vld [vmem:[#allocation2 + $0x90] sm:$0xff]
        %v273 = vld [vmem:[#allocation2 + $0x98] sm:$0xff]
        %v274 = vld [vmem:[#allocation2 + $0xa0] sm:$0xff]
        %v275 = vld [vmem:[#allocation2 + $0xa8] sm:$0xff]
        %v276 = vld [vmem:[#allocation2 + $0xb0] sm:$0xff]
        %v277 = vld [vmem:[#allocation2 + $0xb8] sm:$0xff]
        %v278 = vld [vmem:[#allocation2 + $0xc0] sm:$0xff]
        %v279 = vld [vmem:[#allocation2 + $0xc8] sm:$0xff]
        %v280 = vld [vmem:[#allocation2 + $0xd0] sm:$0xff]
        %v281 = vld [vmem:[#allocation2 + $0xd8] sm:$0xff]
        %v282 = vld [vmem:[#allocation2 + $0xe0] sm:$0xff]
        %v283 = vld [vmem:[#allocation2 + $0xe8] sm:$0xff]
        %v284 = vld [vmem:[#allocation2 + $0xf0] sm:$0xff]
        %v285 = vld [vmem:[#allocation2 + $0xf8] sm:$0xff]
        %v286 = vld [vmem:[#allocation2 + $0x100] sm:$0xff]
        %v287 = vld [vmem:[#allocation2 + $0x108] sm:$0xff]
        %v288 = vld [vmem:[#allocation2 + $0x110] sm:$0xff]
        %v289 = vld [vmem:[#allocation2 + $0x118] sm:$0xff]
        %v290 = vld [vmem:[#allocation2 + $0x120] sm:$0xff]
        %v291 = vld [vmem:[#allocation2 + $0x128] sm:$0xff]
        %v292 = vld [vmem:[#allocation2 + $0x130] sm:$0xff]
        %v293 = vld [vmem:[#allocation2 + $0x138] sm:$0xff]
        %v294 = vld [vmem:[#allocation2 + $0x140] sm:$0xff]
        %v295 = vld [vmem:[#allocation2 + $0x148] sm:$0xff]
        %v296 = vld [vmem:[#allocation2 + $0x150] sm:$0xff]
        %v297 = vld [vmem:[#allocation2 + $0x158] sm:$0xff]
        %v298 = vld [vmem:[#allocation2 + $0x160] sm:$0xff]
        %v299 = vld [vmem:[#allocation2 + $0x168] sm:$0xff]
        %v300 = vld [vmem:[#allocation2 + $0x170] sm:$0xff]
        %v301 = vld [vmem:[#allocation2 + $0x178] sm:$0xff]
        %v302 = vld [vmem:[#allocation2 + $0x180] sm:$0xff]
        %v303 = vld [vmem:[#allocation2 + $0x188] sm:$0xff]
        %v304 = vld [vmem:[#allocation2 + $0x190] sm:$0xff]
        %v305 = vld [vmem:[#allocation2 + $0x198] sm:$0xff]
        %v306 = vld [vmem:[#allocation2 + $0x1a0] sm:$0xff]
        %v307 = vld [vmem:[#allocation2 + $0x1a8] sm:$0xff]
        %v308 = vld [vmem:[#allocation2 + $0x1b0] sm:$0xff]
        %v309 = vld [vmem:[#allocation2 + $0x1b8] sm:$0xff]
        %v310 = vld [vmem:[#allocation2 + $0x1c0] sm:$0xff]
        %v311 = vld [vmem:[#allocation2 + $0x1c8] sm:$0xff]
        %v312 = vld [vmem:[#allocation2 + $0x1d0] sm:$0xff]
        %v313 = vld [vmem:[#allocation2 + $0x1d8] sm:$0xff]
        %v314 = vld [vmem:[#allocation2 + $0x1e0] sm:$0xff]
        %v315 = vld [vmem:[#allocation2 + $0x1e8] sm:$0xff]
        %v316 = vld [vmem:[#allocation2 + $0x1f0] sm:$0xff]
        %v317 = vld [vmem:[#allocation2 + $0x1f8] sm:$0xff]
        %v318 = vld [vmem:[%s2] sm:$0x3]
        %v320 = vlaneseq
        %v321 = vshrl.u32 %v320, 7
        %v322 = vsub.s32 0, %v321
        %v323 = vrot.slane %v318, %v322
        %v324 = vlaneseq
        %v325 = vshrl.u32 %v324, 7
        %v326 = vsub.s32 1, %v325
        %v327 = vrot.slane %v318, %v326
        %330 = vmatprep.subr.mxu0 %v255
        %331 = vmatpush1.msra.mxu0 %v254
        %332 = vmatprep.subr.mxu0 %v257
        %333 = vmatpush1.msra.mxu0 %v256
        %334 = vmatprep.subr.mxu0 %v259
        %335 = vmatpush1.msra.mxu0 %v258
        %336 = vmatprep.subr.mxu0 %v261
        %337 = vmatpush1.msra.mxu0 %v260
        %338 = vmatprep.subr.mxu0 %v263
        %339 = vmatpush1.msra.mxu0 %v262
        %340 = vmatprep.subr.mxu0 %v265
        %341 = vmatpush1.msra.mxu0 %v264
        %342 = vmatprep.subr.mxu0 %v267
        %343 = vmatpush1.msra.mxu0 %v266
        %344 = vmatprep.subr.mxu0 %v269
        %345 = vmatpush1.msra.mxu0 %v268
        %346 = vmatprep.subr.mxu0 %v271
        %347 = vmatpush1.msra.mxu0 %v270
        %348 = vmatprep.subr.mxu0 %v273
        %349 = vmatpush1.msra.mxu0 %v272
        %350 = vmatprep.subr.mxu0 %v275
        %351 = vmatpush1.msra.mxu0 %v274
        %352 = vmatprep.subr.mxu0 %v277
        %353 = vmatpush1.msra.mxu0 %v276
        %354 = vmatprep.subr.mxu0 %v279
        %355 = vmatpush1.msra.mxu0 %v278
        %356 = vmatprep.subr.mxu0 %v281
        %357 = vmatpush1.msra.mxu0 %v280
        %358 = vmatprep.subr.mxu0 %v283
        %359 = vmatpush1.msra.mxu0 %v282
        %360 = vmatprep.subr.mxu0 %v285
        %361 = vmatpush1.msra.mxu0 %v284
        %362 = vmatprep.subr.mxu0 %v287
        %363 = vmatpush1.msra.mxu0 %v286
        %364 = vmatprep.subr.mxu0 %v289
        %365 = vmatpush1.msra.mxu0 %v288
        %366 = vmatprep.subr.mxu0 %v291
        %367 = vmatpush1.msra.mxu0 %v290
        %368 = vmatprep.subr.mxu0 %v293
        %369 = vmatpush1.msra.mxu0 %v292
        %370 = vmatprep.subr.mxu0 %v295
        %371 = vmatpush1.msra.mxu0 %v294
        %372 = vmatprep.subr.mxu0 %v297
        %373 = vmatpush1.msra.mxu0 %v296
        %374 = vmatprep.subr.mxu0 %v299
        %375 = vmatpush1.msra.mxu0 %v298
        %376 = vmatprep.subr.mxu0 %v301
        %377 = vmatpush1.msra.mxu0 %v300
        %378 = vmatprep.subr.mxu0 %v303
        %379 = vmatpush1.msra.mxu0 %v302
        %380 = vmatprep.subr.mxu0 %v305
        %381 = vmatpush1.msra.mxu0 %v304
        %382 = vmatprep.subr.mxu0 %v307
        %383 = vmatpush1.msra.mxu0 %v306
        %384 = vmatprep.subr.mxu0 %v309
        %385 = vmatpush1.msra.mxu0 %v308
        %386 = vmatprep.subr.mxu0 %v311
        %387 = vmatpush1.msra.mxu0 %v310
        %388 = vmatprep.subr.mxu0 %v313
        %389 = vmatpush1.msra.mxu0 %v312
        %390 = vmatprep.subr.mxu0 %v315
        %391 = vmatpush1.msra.mxu0 %v314
        %392 = vmatprep.subr.mxu0 %v317
        %393 = vmatpush1.msra.mxu0 %v316
        %394 = vmatprep.mubr.f32.mxu0 %v247
        %395 = vmatmul.mubr.f32.gmra.mrb[0].mxu0 %v246
        %v396 = vpop.f32.mrb[0].mxu0
        %v397 = vadd.f32 %v323, %v396
        %v398 = vpop.f32.mrb[0].mxu0
        %v399 = vadd.f32 %v327, %v398
        %400 = vmatprep.mubr.f32.mxu0 %v249
        %401 = vmatmul.mubr.f32.gmra.mrb[0].mxu0 %v248
        %v402 = vpop.f32.mrb[0].mxu0
        %v403 = vadd.f32 %v323, %v402
        %v404 = vpop.f32.mrb[0].mxu0
        %v405 = vadd.f32 %v327, %v404
        %406 = vmatprep.mubr.f32.mxu0 %v251
        %407 = vmatmul.mubr.f32.gmra.mrb[0].mxu0 %v250
        %v408 = vpop.f32.mrb[0].mxu0
        %v409 = vadd.f32 %v323, %v408
        %v410 = vpop.f32.mrb[0].mxu0
        %v411 = vadd.f32 %v327, %v410
        %412 = vmatprep.mubr.f32.mxu0 %v253
        %413 = vmatmul.mubr.f32.gmra.mrb[0].mxu0 %v252
        %v414 = vpop.f32.mrb[0].mxu0
        %v415 = vadd.f32 %v323, %v414
        %v416 = vpop.f32.mrb[0].mxu0
        %v417 = vadd.f32 %v327, %v416
        %418 = vdwg.mxu0
        %v419 = vmax.f32 %v397, 0.0
        %v420 = vmax.f32 %v399, 0.0
        %v421 = vmax.f32 %v403, 0.0
        %v422 = vmax.f32 %v405, 0.0
        %v423 = vmax.f32 %v409, 0.0
        %v424 = vmax.f32 %v411, 0.0
        %v425 = vmax.f32 %v415, 0.0
        %v426 = vmax.f32 %v417, 0.0
        %v427 = vld [vmem:[%s3] sm:$0xff]
        %v428 = vld [vmem:[%s3 + $0x8] sm:$0xff]
        %v429 = vld [vmem:[%s3 + $0x10] sm:$0xff]
        %v430 = vld [vmem:[%s3 + $0x18] sm:$0xff]
        %v431 = vld [vmem:[%s3 + $0x20] sm:$0xff]
        %v432 = vld [vmem:[%s3 + $0x28] sm:$0xff]
        %v433 = vld [vmem:[%s3 + $0x30] sm:$0xff]
        %v434 = vld [vmem:[%s3 + $0x38] sm:$0xff]
        %v435 = vld [vmem:[%s3 + $0x40] sm:$0xff]
        %v436 = vld [vmem:[%s3 + $0x48] sm:$0xff]
        %v437 = vld [vmem:[%s3 + $0x50] sm:$0xff]
        %v438 = vld [vmem:[%s3 + $0x58] sm:$0xff]
        %v439 = vld [vmem:[%s3 + $0x60] sm:$0xff]
        %v440 = vld [vmem:[%s3 + $0x68] sm:$0xff]
        %v441 = vld [vmem:[%s3 + $0x70] sm:$0xff]
        %v442 = vld [vmem:[%s3 + $0x78] sm:$0xff]
        %v443 = vld [vmem:[%s3 + $0x80] sm:$0xff]
        %v444 = vld [vmem:[%s3 + $0x88] sm:$0xff]
        %v445 = vld [vmem:[%s3 + $0x90] sm:$0xff]
        %v446 = vld [vmem:[%s3 + $0x98] sm:$0xff]
        %v447 = vld [vmem:[%s3 + $0xa0] sm:$0xff]
        %v448 = vld [vmem:[%s3 + $0xa8] sm:$0xff]
        %v449 = vld [vmem:[%s3 + $0xb0] sm:$0xff]
        %v450 = vld [vmem:[%s3 + $0xb8] sm:$0xff]
        %v451 = vld [vmem:[%s3 + $0xc0] sm:$0xff]
        %v452 = vld [vmem:[%s3 + $0xc8] sm:$0xff]
        %v453 = vld [vmem:[%s3 + $0xd0] sm:$0xff]
        %v454 = vld [vmem:[%s3 + $0xd8] sm:$0xff]
        %v455 = vld [vmem:[%s3 + $0xe0] sm:$0xff]
        %v456 = vld [vmem:[%s3 + $0xe8] sm:$0xff]
        %v457 = vld [vmem:[%s3 + $0xf0] sm:$0xff]
        %v458 = vld [vmem:[%s3 + $0xf8] sm:$0xff]
        %v459 = vld [vmem:[%s4] sm:$0x1]
        %v461 = vlaneseq
        %v462 = vshrl.u32 %v461, 7
        %v463 = vsub.s32 0, %v462
        %v464 = vrot.slane %v459, %v463
        %466 = vmatprep.subr.mxu0 0.0
        %467 = vmatpush1.msra.mxu0 %v427
        %468 = vmatprep.subr.mxu0 0.0
        %469 = vmatpush1.msra.mxu0 %v428
        %470 = vmatprep.subr.mxu0 0.0
        %471 = vmatpush1.msra.mxu0 %v429
        %472 = vmatprep.subr.mxu0 0.0
        %473 = vmatpush1.msra.mxu0 %v430
        %474 = vmatprep.subr.mxu0 0.0
        %475 = vmatpush1.msra.mxu0 %v431
        %476 = vmatprep.subr.mxu0 0.0
        %477 = vmatpush1.msra.mxu0 %v432
        %478 = vmatprep.subr.mxu0 0.0
        %479 = vmatpush1.msra.mxu0 %v433
        %480 = vmatprep.subr.mxu0 0.0
        %481 = vmatpush1.msra.mxu0 %v434
        %482 = vmatprep.subr.mxu0 0.0
        %483 = vmatpush1.msra.mxu0 %v435
        %484 = vmatprep.subr.mxu0 0.0
        %485 = vmatpush1.msra.mxu0 %v436
        %486 = vmatprep.subr.mxu0 0.0
        %487 = vmatpush1.msra.mxu0 %v437
        %488 = vmatprep.subr.mxu0 0.0
        %489 = vmatpush1.msra.mxu0 %v438
        %490 = vmatprep.subr.mxu0 0.0
        %491 = vmatpush1.msra.mxu0 %v439
        %492 = vmatprep.subr.mxu0 0.0
        %493 = vmatpush1.msra.mxu0 %v440
        %494 = vmatprep.subr.mxu0 0.0
        %495 = vmatpush1.msra.mxu0 %v441
        %496 = vmatprep.subr.mxu0 0.0
        %497 = vmatpush1.msra.mxu0 %v442
        %498 = vmatprep.subr.mxu0 0.0
        %499 = vmatpush1.msra.mxu0 %v443
        %500 = vmatprep.subr.mxu0 0.0
        %501 = vmatpush1.msra.mxu0 %v444
        %502 = vmatprep.subr.mxu0 0.0
        %503 = vmatpush1.msra.mxu0 %v445
        %504 = vmatprep.subr.mxu0 0.0
        %505 = vmatpush1.msra.mxu0 %v446
        %506 = vmatprep.subr.mxu0 0.0
        %507 = vmatpush1.msra.mxu0 %v447
        %508 = vmatprep.subr.mxu0 0.0
        %509 = vmatpush1.msra.mxu0 %v448
        %510 = vmatprep.subr.mxu0 0.0
        %511 = vmatpush1.msra.mxu0 %v449
        %512 = vmatprep.subr.mxu0 0.0
        %513 = vmatpush1.msra.mxu0 %v450
        %514 = vmatprep.subr.mxu0 0.0
        %515 = vmatpush1.msra.mxu0 %v451
        %516 = vmatprep.subr.mxu0 0.0
        %517 = vmatpush1.msra.mxu0 %v452
        %518 = vmatprep.subr.mxu0 0.0
        %519 = vmatpush1.msra.mxu0 %v453
        %520 = vmatprep.subr.mxu0 0.0
        %521 = vmatpush1.msra.mxu0 %v454
        %522 = vmatprep.subr.mxu0 0.0
        %523 = vmatpush1.msra.mxu0 %v455
        %524 = vmatprep.subr.mxu0 0.0
        %525 = vmatpush1.msra.mxu0 %v456
        %526 = vmatprep.subr.mxu0 0.0
        %527 = vmatpush1.msra.mxu0 %v457
        %528 = vmatprep.subr.mxu0 0.0
        %529 = vmatpush1.msra.mxu0 %v458
        %530 = vmatprep.mubr.f32.mxu0 %v420
        %531 = vmatmul.mubr.f32.gmra.mrb[0].mxu0 %v419
        %v532 = vpop.f32.mrb[0].mxu0
        %v533 = vadd.f32 %v464, %v532
        %v534 = vpop.f32.mrb[0].mxu0
        %535 = vmatprep.mubr.f32.mxu0 %v422
        %536 = vmatmul.mubr.f32.gmra.mrb[0].mxu0 %v421
        %v537 = vpop.f32.mrb[0].mxu0
        %v538 = vadd.f32 %v464, %v537
        %v539 = vpop.f32.mrb[0].mxu0
        %540 = vmatprep.mubr.f32.mxu0 %v424
        %541 = vmatmul.mubr.f32.gmra.mrb[0].mxu0 %v423
        %v542 = vpop.f32.mrb[0].mxu0
        %v543 = vadd.f32 %v464, %v542
        %v544 = vpop.f32.mrb[0].mxu0
        %545 = vmatprep.mubr.f32.mxu0 %v426
        %546 = vmatmul.mubr.f32.gmra.mrb[0].mxu0 %v425
        %v547 = vpop.f32.mrb[0].mxu0
        %v548 = vadd.f32 %v464, %v547
        %v549 = vpop.f32.mrb[0].mxu0
        %550 = vdwg.mxu0
        %v551 = vmax.f32 %v533, 0.0
        %v552 = vmax.f32 %v538, 0.0
        %v553 = vmax.f32 %v543, 0.0
        %v554 = vmax.f32 %v548, 0.0
        %vm555 = vcmask 261120
        %556 = vst.msk [vmem:[%s244] sm:$0xff] %vm555, %v551
        %557 = vst.msk [vmem:[%s244 + $0x8] sm:$0xff] %vm555, %v552
        %558 = vst.msk [vmem:[%s244 + $0x10] sm:$0xff] %vm555, %v553
        %559 = vst.msk [vmem:[%s244 + $0x18] sm:$0xff] %vm555, %v554
        %s560 = smul.u32 4, %s17
        %p561 = scmp.lt.s32.totalorder %s560, 15
        %s562 = scalar_select %p561, %s560, 15
        %s563 = smul.addr %s562, 8
        %s564 = scalar_lea.vmem %s5, %s563
        // Predicated region
        $region45: #{tpu_custom_call.1} parent=39 // pred_check
          %p565 = pneg %p145
        $region46: #{tpu_custom_call.1} parent=39 // pred_check_branch
          %567 = sbr.rel (%p565) target = $region48
        $region47: #{tpu_custom_call.1} parent=39 // pred_region
          %s568 = smul.u32 4, %s17
        $region48: #{tpu_custom_call.1} parent=39 // pred_fallthru
          _
      $region40: #{tpu_custom_call.1} parent=5 // pred_fallthru
        _
      %p569 = scmp.le.s32.totalorder 2, %s12
      // Predicated region
      $region49: #{tpu_custom_call.1} parent=5 // pred_check
        %p570 = pneg %p569
      $region50: #{tpu_custom_call.1} parent=5 // pred_check_branch
        %572 = sbr.rel (%p570) target = $region52
      $region51: #{tpu_custom_call.1} parent=5 // pred_region
        %s573 = ssub.s32 %s12, 2
        // Predicated region
        $region53: #{tpu_custom_call.1} parent=51 // pred_check
          %p574 = pneg %p151
        $region54: #{tpu_custom_call.1} parent=51 // pred_check_branch
          %576 = sbr.rel (%p574) target = $region56
        $region55: #{tpu_custom_call.1} parent=51 // pred_region
          %s577 = smul.u32 4, %s18
          %p578 = scmp.lt.s32.totalorder %s577, 15
          %s579 = scalar_select %p578, %s577, 15
          %s580 = smul.addr %s579, 8
          %s581 = scalar_lea.vmem %s5, %s580
        $region56: #{tpu_custom_call.1} parent=51 // pred_fallthru
          _
      $region52: #{tpu_custom_call.1} parent=5 // pred_fallthru
        _
    $region6: #{tpu_custom_call.1} parent=1 // loop_footer
      %s16 = sadd.s32 1, %s12
    $region7: #{tpu_custom_call.1} parent=1 // loop_footer_branch
      %11 = sbr.rel target = $region3
    $region8: #{tpu_custom_call.1} parent=1 // loop_exit
      _
    %582 = vsyncpa [#allocation3], 1
    %s583 = scalar_lea.sflag [#allocation3], 1
    %584 = vsyncpa %s583, 1

</llo_original>
